<compile_context>
chip_gen: v7x
topology: tpu7x:2x2x1
jax: 0.10.0
libtpu: 0.0.40
codegen_flags: <defaults>
</compile_context>

<pallas_src>
from functools import partial

import jax
import jax.numpy as jnp
from jax import lax
from jax.experimental import pallas as pl
from jax.experimental.pallas import tpu as pltpu


def _round_up(x, m):
    return ((x + m - 1) // m) * m


def _logits_kernel(x_ref, w_ref, *rest, soft_cap, scale, has_bias):
    """One (tm, tn) output tile; full hidden dim reduced in a single MXU call.

    x_ref: (tm, H) hidden rows, w_ref: (tn, H) weight rows (native [V, H]).
    """
    if has_bias:
        b_ref, o_ref = rest
    else:
        (o_ref,) = rest

    # logits[t, v] = sum_h x[t, h] * w[v, h]   (== hidden @ W^T)
    logits = lax.dot_general(
        x_ref[...], w_ref[...],
        dimension_numbers=(((1,), (1,)), ((), ())),
        preferred_element_type=jnp.float32,
    )
    if has_bias:
        logits = logits + b_ref[...].astype(jnp.float32)
    if soft_cap is not None:
        logits = jnp.tanh(logits * (1.0 / soft_cap)) * soft_cap   # EUP tanh
    if scale != 1.0:
        logits = logits * scale
    o_ref[...] = logits.astype(o_ref.dtype)


def logits_processor_forward(
    lm_head_weight,              # [vocab_size, hidden]  (native layout, not transposed)
    hidden_states,               # [num_rows, hidden]
    *,
    selected_token_indices=None, # optional [num_tokens] int32
    embedding_bias=None,         # optional [vocab_size]
    org_vocab_size=None,
    scale=1.0,
    soft_cap=None,
    out_dtype=jnp.float32,
):
    # 1. _prune_hidden_states (glue: gather rows)
    if selected_token_indices is not None:
        hidden_states = jnp.take(hidden_states, selected_token_indices, axis=0)

    T, H = hidden_states.shape
    V, Hw = lm_head_weight.shape
    assert H == Hw
    org_vocab_size = org_vocab_size or V
    has_bias = embedding_bias is not None

    # --- tile selection ---------------------------------------------------
    # Rows: cover all tokens in one tile when possible -> weight streams once.
    tm = min(_round_up(T, 8), 256)
    # Hidden: single reduction step (no K grid axis).
    tk = H
    # Vocab: largest lane-dense tile fitting a conservative VMEM budget.
    x_bytes = jnp.dtype(hidden_states.dtype).itemsize
    w_bytes = jnp.dtype(lm_head_weight.dtype).itemsize
    o_bytes = jnp.dtype(out_dtype).itemsize
    vocab_cap = _round_up(org_vocab_size, 128)
    budget = 40 * 1024 * 1024          # double-buffered operands budget
    tn = 128
    vmem_need = 0
    for cand in (2048, 1024, 512, 384, 256, 128):
        if cand > vocab_cap:
            continue
        need = (2 * (tm * tk * x_bytes + cand * tk * w_bytes)   # dbl-buffered inputs
                + 2 * tm * cand * o_bytes                       # dbl-buffered output
                + (2 * cand * 4 if has_bias else 0))
        if need <= budget or cand == 128:
            tn = cand
            vmem_need = need
            break
    tn = min(tn, vocab_cap)
    vmem_limit = int(min(max(vmem_need + (8 << 20), 32 << 20), 60 << 20))

    # Only compute the vocab range we keep (skip TP-padding region).
    nj = pl.cdiv(org_vocab_size, tn)
    Vc = nj * tn
    grid = (pl.cdiv(T, tm), nj)

    kernel = partial(_logits_kernel, soft_cap=soft_cap, scale=scale,
                     has_bias=has_bias)

    in_specs = [
        pl.BlockSpec((tm, tk), lambda i, j: (i, 0)),   # hidden rows
        pl.BlockSpec((tn, tk), lambda i, j: (j, 0)),   # weight rows (native [V, H])
    ]
    inputs = [hidden_states, lm_head_weight]
    if has_bias:
        in_specs.append(pl.BlockSpec((1, tn), lambda i, j: (0, j)))
        inputs.append(embedding_bias.reshape(1, V).astype(jnp.float32))

    cost = pl.CostEstimate(
        flops=2 * T * Vc * H,
        transcendentals=(T * Vc) if soft_cap is not None else 0,
        bytes_accessed=(T * H * x_bytes + Vc * H * w_bytes + T * Vc * o_bytes
                        + (Vc * 4 if has_bias else 0)),
    )

    logits = pl.pallas_call(
        kernel,
        out_shape=jax.ShapeDtypeStruct((T, Vc), out_dtype),
        grid_spec=pltpu.PrefetchScalarGridSpec(
            num_scalar_prefetch=0,
            grid=grid,
            in_specs=in_specs,
            out_specs=pl.BlockSpec((tm, tn), lambda i, j: (i, j)),
        ),
        compiler_params=pltpu.CompilerParams(
            dimension_semantics=("parallel", "parallel"),
            vmem_limit_bytes=vmem_limit,
        ),
        cost_estimate=cost,
    )(*inputs)

    # 2. slice to org_vocab_size (no-op view when Vc == org_vocab_size)
    if Vc != org_vocab_size:
        logits = logits[:, :org_vocab_size]
    return logits


def _reference(lm_head_weight, hidden_states, selected_token_indices,
               embedding_bias, org_vocab_size, scale, soft_cap):
    h = jnp.take(hidden_states, selected_token_indices, axis=0)
    logits = h.astype(jnp.float32) @ lm_head_weight.astype(jnp.float32).T
    if embedding_bias is not None:
        logits = logits + embedding_bias.astype(jnp.float32)
    logits = logits[..., :org_vocab_size]
    if soft_cap is not None:
        logits = jnp.tanh(logits / soft_cap) * soft_cap
    if scale != 1.0:
        logits = logits * scale
    return logits


if __name__ == "__main__":
    key = jax.random.PRNGKey(0)
    k1, k2, k3, k4 = jax.random.split(key, 4)

    num_rows = 24        # rows of hidden_states before pruning
    num_tokens = 16      # selected_token_indices length
    hidden = 128
    vocab_size = 512
    org_vocab_size = 384
    scale = 0.5
    soft_cap = 30.0

    hidden_states = jax.random.normal(k1, (num_rows, hidden), dtype=jnp.float32)
    lm_head_weight = jax.random.normal(k2, (vocab_size, hidden),
                                       dtype=jnp.float32) * 0.02
    embedding_bias = jax.random.normal(k3, (vocab_size,), dtype=jnp.float32) * 0.1
    selected_token_indices = jax.random.permutation(
        k4, jnp.arange(num_rows, dtype=jnp.int32))[:num_tokens]

    out = logits_processor_forward(
        lm_head_weight, hidden_states,
        selected_token_indices=selected_token_indices,
        embedding_bias=embedding_bias,
        org_vocab_size=org_vocab_size,
        scale=scale, soft_cap=soft_cap,
    )
    out = jax.block_until_ready(out)

    ref = _reference(lm_head_weight, hidden_states, selected_token_indices,
                     embedding_bias, org_vocab_size, scale, soft_cap)
    assert out.shape == (num_tokens, org_vocab_size), out.shape
    assert jnp.allclose(out, ref, atol=1e-4, rtol=1e-4), float(
        jnp.max(jnp.abs(out - ref)))

    # Also exercise the no-bias / no-cap / unit-scale fast path.
    out2 = logits_processor_forward(
        lm_head_weight, hidden_states,
        selected_token_indices=selected_token_indices,
        org_vocab_size=org_vocab_size,
    )
    out2 = jax.block_until_ready(out2)
    ref2 = _reference(lm_head_weight, hidden_states, selected_token_indices,
                      None, org_vocab_size, 1.0, None)
    assert jnp.allclose(out2, ref2, atol=1e-4, rtol=1e-4), float(
        jnp.max(jnp.abs(out2 - ref2)))

    print("KERNEL_OK")
</pallas_src>

<mosaic_0001>
module attributes {stable_mosaic.version = 11 : i64} {
  func.func @_logits_kernel(%arg0: i32, %arg1: i32, %arg2: memref<16x128xf32, #tpu.memory_space<vmem>>, %arg3: memref<384x128xf32, #tpu.memory_space<vmem>>, %arg4: memref<1x384xf32, #tpu.memory_space<vmem>>, %arg5: memref<16x384xf32, #tpu.memory_space<vmem>>) attributes {dimension_semantics = [#tpu.dimension_semantics<parallel>, #tpu.dimension_semantics<parallel>], iteration_bounds = array<i64: 1, 1>, scalar_prefetch = 0 : i64, scratch_operands = 0 : i64, tpu.core_type = #tpu.core_type<tc>, window_params = [{transform_indices = @transform_0, window_bounds = array<i64: 16, 128>}, {transform_indices = @transform_1, window_bounds = array<i64: 384, 128>}, {transform_indices = @transform_2, window_bounds = array<i64: 1, 384>}, {transform_indices = @transform_3, window_bounds = array<i64: 16, 384>}]} {
    %c0 = arith.constant 0 : index
    %c0_0 = arith.constant 0 : index
    %0 = vector.load %arg2[%c0, %c0_0] : memref<16x128xf32, #tpu.memory_space<vmem>>, vector<16x128xf32>
    %c0_1 = arith.constant 0 : index
    %c0_2 = arith.constant 0 : index
    %1 = vector.load %arg3[%c0_1, %c0_2] : memref<384x128xf32, #tpu.memory_space<vmem>>, vector<384x128xf32>
    %cst = arith.constant dense<0.000000e+00> : vector<16x384xf32>
    %2 = tpu.matmul %0, %1, %cst {dimension_numbers = #tpu.dot_dimension_numbers<[1], [1], [0], [0], [0, 0, 1, 0], [], []>} : vector<16x128xf32>, vector<384x128xf32>, vector<16x384xf32> -> vector<16x384xf32>
    %c0_3 = arith.constant 0 : index
    %c0_4 = arith.constant 0 : index
    %3 = vector.load %arg4[%c0_3, %c0_4] : memref<1x384xf32, #tpu.memory_space<vmem>>, vector<1x384xf32>
    %4 = vector.broadcast %3 : vector<1x384xf32> to vector<16x384xf32>
    %5 = arith.addf %2, %4 : vector<16x384xf32>
    %cst_5 = arith.constant 0.0333333351 : f32
    %6 = vector.broadcast %cst_5 : f32 to vector<16x384xf32>
    %7 = arith.mulf %5, %6 : vector<16x384xf32>
    %8 = math.tanh %7 : vector<16x384xf32>
    %cst_6 = arith.constant 3.000000e+01 : f32
    %9 = vector.broadcast %cst_6 : f32 to vector<16x384xf32>
    %10 = arith.mulf %8, %9 : vector<16x384xf32>
    %cst_7 = arith.constant 5.000000e-01 : f32
    %11 = vector.broadcast %cst_7 : f32 to vector<16x384xf32>
    %12 = arith.mulf %10, %11 : vector<16x384xf32>
    %c0_8 = arith.constant 0 : index
    %c0_9 = arith.constant 0 : index
    %13 = vector.load %arg5[%c0_8, %c0_9] : memref<16x384xf32, #tpu.memory_space<vmem>>, vector<16x384xf32>
    tpu.vector_store %arg5[%c0_8, %c0_9], %12 {strides = array<i32>} : memref<16x384xf32, #tpu.memory_space<vmem>>, vector<16x384xf32>,
    return
  }
  func.func @transform_0(%arg0: i32, %arg1: i32) -> (i32, i32) {
    %c0_i32 = arith.constant 0 : i32
    %c0_i32_0 = arith.constant 0 : i32
    return %arg0, %c0_i32 : i32, i32
  }
  func.func @transform_1(%arg0: i32, %arg1: i32) -> (i32, i32) {
    %c0_i32 = arith.constant 0 : i32
    %c0_i32_0 = arith.constant 0 : i32
    return %arg1, %c0_i32 : i32, i32
  }
  func.func @transform_2(%arg0: i32, %arg1: i32) -> (i32, i32) {
    %c0_i32 = arith.constant 0 : i32
    %c0_i32_0 = arith.constant 0 : i32
    return %c0_i32, %arg1 : i32, i32
  }
  func.func @transform_3(%arg0: i32, %arg1: i32) -> (i32, i32) {
    %c0_i32 = arith.constant 0 : i32
    return %arg0, %arg1 : i32, i32
  }
}

</mosaic_0001>

<llo_original>
// kernel: tpu_custom_call.1
$region0: #{tpu_custom_call.1}
  #allocation0 [shape = 'u32[]', space=smem, size = 0x4, offset = 0x4, fixed_abs, tag = 'smem constant byte address 0x4 - core index']
  #allocation1 [shape = 'u32[144,128]{1,0:T(1,128)}', space=vmem, size = 0x12000, scoped, tag = 'internal scratch']
  %s0 = inlined_call_operand.hbm [shape: f32[16,128], index: 0, kind: input, shape index: {}]
  %s1 = inlined_call_operand.hbm [shape: f32[512,128], index: 1, kind: input, shape index: {}]
  %s2 = inlined_call_operand.vmem [shape: f32[1,512], index: 2, kind: input, shape index: {}]
  %s3 = inlined_call_operand.hbm [shape: f32[16,384], index: 3, kind: output, shape index: {}]
  %s4 = sld [smem:[#allocation0]]
  $region30: #{tpu_custom_call.1} parent=0
    _
  %s6 = ssub.s32 1, %s4
  %s7 = scalar_select 0, %s6, %s4
  $region1: #{tpu_custom_call.1} parent=0
    #allocation2 [shape = 'u8[8192]{0}', space=vmem, size = 0x2000, scoped, tag = 'input window, operand 0, single buffered']
    #allocation3 [shape = 's32[1]{0}', space=sflag, size = 0x4, scoped, tag = 'scoped memory for tpu_custom_call.1']
    #allocation4 [shape = 's32[1]{0}', space=sflag, size = 0x4, scoped, tag = 'scoped memory for tpu_custom_call.1']
    #allocation5 [shape = 'u8[196608]{0}', space=vmem, size = 0x30000, scoped, tag = 'input window, operand 1, single buffered']
    #allocation6 [shape = 's32[1]{0}', space=sflag, size = 0x4, scoped, tag = 'scoped memory for tpu_custom_call.1']
    #allocation7 [shape = 'u8[24576]{0}', space=vmem, size = 0x6000, scoped, tag = 'output window, operand 0, single buffered']
    %8 = vsyncpa [#allocation3], 0
    %9 = vsyncpa [#allocation6], 0
    %10 = vsyncpa [#allocation4], 0
    // Predicated region
    $region2: #{tpu_custom_call.1} parent=1 // pred_check
      _
    $region3: #{tpu_custom_call.1} parent=1 // pred_check_branch
      %12 = sbr.rel (0) target = $region5
    $region4: #{tpu_custom_call.1} parent=1 // pred_region
      %s14 = ssub.s32 256, 256
      %15 = vsyncadd [#allocation3], %s14
      %s16 = sshll.u32 [#allocation2], 4
      %s17 = int_to_ptr.vmem [resolvable:$true] %s16
      %22 = dma.hbm_to_vmem [thread:$0]  %s0, 256, %s17, [#allocation3], 128, 128, 8
    $region5: #{tpu_custom_call.1} parent=1 // pred_fallthru
      _
    // Predicated region
    $region6: #{tpu_custom_call.1} parent=1 // pred_check
      _
    $region7: #{tpu_custom_call.1} parent=1 // pred_check_branch
      %24 = sbr.rel (0) target = $region9
    $region8: #{tpu_custom_call.1} parent=1 // pred_region
      %s26 = ssub.s32 6144, 6144
      %27 = vsyncadd [#allocation6], %s26
      %s28 = sshll.u32 [#allocation5], 4
      %s29 = int_to_ptr.vmem [resolvable:$true] %s28
      %34 = dma.hbm_to_vmem [thread:$0]  %s1, 6144, %s29, [#allocation6], 128, 128, 8
    $region9: #{tpu_custom_call.1} parent=1 // pred_fallthru
      _
    // Predicated region
    $region10: #{tpu_custom_call.1} parent=1 // pred_check
      _
    $region11: #{tpu_custom_call.1} parent=1 // pred_check_branch
      %36 = sbr.rel (0) target = $region13
    $region12: #{tpu_custom_call.1} parent=1 // pred_region
      _
    $region13: #{tpu_custom_call.1} parent=1 // pred_fallthru
      _
    // Predicated region
    $region14: #{tpu_custom_call.1} parent=1 // pred_check
      _
    $region15: #{tpu_custom_call.1} parent=1 // pred_check_branch
      %38 = sbr.rel (0) target = $region17
    $region16: #{tpu_custom_call.1} parent=1 // pred_region
      %39 = dma.done [#allocation3], 256
    $region17: #{tpu_custom_call.1} parent=1 // pred_fallthru
      _
    // Predicated region
    $region18: #{tpu_custom_call.1} parent=1 // pred_check
      _
    $region19: #{tpu_custom_call.1} parent=1 // pred_check_branch
      %41 = sbr.rel (0) target = $region21
    $region20: #{tpu_custom_call.1} parent=1 // pred_region
      %42 = dma.done [#allocation6], 6144
    $region21: #{tpu_custom_call.1} parent=1 // pred_fallthru
      _
    %v43 = vld [vmem:[#allocation2] sm:$0xff]
    %v44 = vld [vmem:[#allocation2 + $0x8] sm:$0xff]
    %v45 = vld [vmem:[#allocation5] sm:$0xff]
    %v46 = vld [vmem:[#allocation5 + $0x8] sm:$0xff]
    %v47 = vld [vmem:[#allocation5 + $0x10] sm:$0xff]
    %v48 = vld [vmem:[#allocation5 + $0x18] sm:$0xff]
    %v49 = vld [vmem:[#allocation5 + $0x20] sm:$0xff]
    %v50 = vld [vmem:[#allocation5 + $0x28] sm:$0xff]
    %v51 = vld [vmem:[#allocation5 + $0x30] sm:$0xff]
    %v52 = vld [vmem:[#allocation5 + $0x38] sm:$0xff]
    %v53 = vld [vmem:[#allocation5 + $0x40] sm:$0xff]
    %v54 = vld [vmem:[#allocation5 + $0x48] sm:$0xff]
    %v55 = vld [vmem:[#allocation5 + $0x50] sm:$0xff]
    %v56 = vld [vmem:[#allocation5 + $0x58] sm:$0xff]
    %v57 = vld [vmem:[#allocation5 + $0x60] sm:$0xff]
    %v58 = vld [vmem:[#allocation5 + $0x68] sm:$0xff]
    %v59 = vld [vmem:[#allocation5 + $0x70] sm:$0xff]
    %v60 = vld [vmem:[#allocation5 + $0x78] sm:$0xff]
    %v61 = vld [vmem:[#allocation5 + $0x80] sm:$0xff]
    %v62 = vld [vmem:[#allocation5 + $0x88] sm:$0xff]
    %v63 = vld [vmem:[#allocation5 + $0x90] sm:$0xff]
    %v64 = vld [vmem:[#allocation5 + $0x98] sm:$0xff]
    %v65 = vld [vmem:[#allocation5 + $0xa0] sm:$0xff]
    %v66 = vld [vmem:[#allocation5 + $0xa8] sm:$0xff]
    %v67 = vld [vmem:[#allocation5 + $0xb0] sm:$0xff]
    %v68 = vld [vmem:[#allocation5 + $0xb8] sm:$0xff]
    %v69 = vld [vmem:[#allocation5 + $0xc0] sm:$0xff]
    %v70 = vld [vmem:[#allocation5 + $0xc8] sm:$0xff]
    %v71 = vld [vmem:[#allocation5 + $0xd0] sm:$0xff]
    %v72 = vld [vmem:[#allocation5 + $0xd8] sm:$0xff]
    %v73 = vld [vmem:[#allocation5 + $0xe0] sm:$0xff]
    %v74 = vld [vmem:[#allocation5 + $0xe8] sm:$0xff]
    %v75 = vld [vmem:[#allocation5 + $0xf0] sm:$0xff]
    %v76 = vld [vmem:[#allocation5 + $0xf8] sm:$0xff]
    %v77 = vld [vmem:[#allocation5 + $0x100] sm:$0xff]
    %v78 = vld [vmem:[#allocation5 + $0x108] sm:$0xff]
    %v79 = vld [vmem:[#allocation5 + $0x110] sm:$0xff]
    %v80 = vld [vmem:[#allocation5 + $0x118] sm:$0xff]
    %v81 = vld [vmem:[#allocation5 + $0x120] sm:$0xff]
    %v82 = vld [vmem:[#allocation5 + $0x128] sm:$0xff]
    %v83 = vld [vmem:[#allocation5 + $0x130] sm:$0xff]
    %v84 = vld [vmem:[#allocation5 + $0x138] sm:$0xff]
    %v85 = vld [vmem:[#allocation5 + $0x140] sm:$0xff]
    %v86 = vld [vmem:[#allocation5 + $0x148] sm:$0xff]
    %v87 = vld [vmem:[#allocation5 + $0x150] sm:$0xff]
    %v88 = vld [vmem:[#allocation5 + $0x158] sm:$0xff]
    %v89 = vld [vmem:[#allocation5 + $0x160] sm:$0xff]
    %v90 = vld [vmem:[#allocation5 + $0x168] sm:$0xff]
    %v91 = vld [vmem:[#allocation5 + $0x170] sm:$0xff]
    %v92 = vld [vmem:[#allocation5 + $0x178] sm:$0xff]
    %v93 = vld [vmem:[%s2] sm:$0x7]
    %v95 = vlaneseq
    %v96 = vshrl.u32 %v95, 7
    %v97 = vsub.s32 0, %v96
    %v98 = vrot.slane %v93, %v97
    %v99 = vlaneseq
    %v100 = vshrl.u32 %v99, 7
    %v101 = vsub.s32 1, %v100
    %v102 = vrot.slane %v93, %v101
    %v103 = vlaneseq
    %v104 = vshrl.u32 %v103, 7
    %v105 = vsub.s32 2, %v104
    %v106 = vrot.slane %v93, %v105
    %110 = vmatprep.subr.mxu0 0.0
    %111 = vmatpush1.xpose.msra.mxu0 %v45
    %112 = vmatprep.subr.mxu0 0.0
    %113 = vmatpush1.xpose.msra.mxu0 %v46
    %114 = vmatprep.subr.mxu0 0.0
    %115 = vmatpush1.xpose.msra.mxu0 %v47
    %116 = vmatprep.subr.mxu0 0.0
    %117 = vmatpush1.xpose.msra.mxu0 %v48
    %118 = vmatprep.subr.mxu0 0.0
    %119 = vmatpush1.xpose.msra.mxu0 %v49
    %120 = vmatprep.subr.mxu0 0.0
    %121 = vmatpush1.xpose.msra.mxu0 %v50
    %122 = vmatprep.subr.mxu0 0.0
    %123 = vmatpush1.xpose.msra.mxu0 %v51
    %124 = vmatprep.subr.mxu0 0.0
    %125 = vmatpush1.xpose.msra.mxu0 %v52
    %126 = vmatprep.subr.mxu0 0.0
    %127 = vmatpush1.xpose.msra.mxu0 %v53
    %128 = vmatprep.subr.mxu0 0.0
    %129 = vmatpush1.xpose.msra.mxu0 %v54
    %130 = vmatprep.subr.mxu0 0.0
    %131 = vmatpush1.xpose.msra.mxu0 %v55
    %132 = vmatprep.subr.mxu0 0.0
    %133 = vmatpush1.xpose.msra.mxu0 %v56
    %134 = vmatprep.subr.mxu0 0.0
    %135 = vmatpush1.xpose.msra.mxu0 %v57
    %136 = vmatprep.subr.mxu0 0.0
    %137 = vmatpush1.xpose.msra.mxu0 %v58
    %138 = vmatprep.subr.mxu0 0.0
    %139 = vmatpush1.xpose.msra.mxu0 %v59
    %140 = vmatprep.subr.mxu0 0.0
    %141 = vmatpush1.xpose.msra.mxu0 %v60
    %142 = vmatprep.subr.mxu0 0.0
    %143 = vmatpush1.xpose.msra.mxu0 %v61
    %144 = vmatprep.subr.mxu0 0.0
    %145 = vmatpush1.xpose.msra.mxu0 %v62
    %146 = vmatprep.subr.mxu0 0.0
    %147 = vmatpush1.xpose.msra.mxu0 %v63
    %148 = vmatprep.subr.mxu0 0.0
    %149 = vmatpush1.xpose.msra.mxu0 %v64
    %150 = vmatprep.subr.mxu0 0.0
    %151 = vmatpush1.xpose.msra.mxu0 %v65
    %152 = vmatprep.subr.mxu0 0.0
    %153 = vmatpush1.xpose.msra.mxu0 %v66
    %154 = vmatprep.subr.mxu0 0.0
    %155 = vmatpush1.xpose.msra.mxu0 %v67
    %156 = vmatprep.subr.mxu0 0.0
    %157 = vmatpush1.xpose.msra.mxu0 %v68
    %158 = vmatprep.subr.mxu0 0.0
    %159 = vmatpush1.xpose.msra.mxu0 %v69
    %160 = vmatprep.subr.mxu0 0.0
    %161 = vmatpush1.xpose.msra.mxu0 %v70
    %162 = vmatprep.subr.mxu0 0.0
    %163 = vmatpush1.xpose.msra.mxu0 %v71
    %164 = vmatprep.subr.mxu0 0.0
    %165 = vmatpush1.xpose.msra.mxu0 %v72
    %166 = vmatprep.subr.mxu0 0.0
    %167 = vmatpush1.xpose.msra.mxu0 %v73
    %168 = vmatprep.subr.mxu0 0.0
    %169 = vmatpush1.xpose.msra.mxu0 %v74
    %170 = vmatprep.subr.mxu0 0.0
    %171 = vmatpush1.xpose.msra.mxu0 %v75
    %172 = vmatprep.subr.mxu0 0.0
    %173 = vmatpush1.xpose.msra.mxu0 %v76
    %174 = vmatprep.mubr.f32.mxu0 0.0
    %175 = vmatmul.mubr.f32.gmra.mrb[0].mxu0 %v43
    %v176 = vpop.f32.mrb[0].mxu0
    %v177 = vadd.f32 %v98, %v176
    %v178 = vpop.f32.mrb[0].mxu0
    %v179 = vadd.f32 %v102, %v178
    %180 = vmatprep.mubr.f32.mxu0 0.0
    %181 = vmatmul.mubr.f32.gmra.mrb[0].mxu0 %v44
    %v182 = vpop.f32.mrb[0].mxu0
    %v183 = vadd.f32 %v98, %v182
    %v184 = vpop.f32.mrb[0].mxu0
    %v185 = vadd.f32 %v102, %v184
    %186 = vdwg.mxu0
    %187 = vmatprep.subr.mxu0 0.0
    %188 = vmatpush1.xpose.msra.mxu0 %v77
    %189 = vmatprep.subr.mxu0 0.0
    %190 = vmatpush1.xpose.msra.mxu0 %v78
    %191 = vmatprep.subr.mxu0 0.0
    %192 = vmatpush1.xpose.msra.mxu0 %v79
    %193 = vmatprep.subr.mxu0 0.0
    %194 = vmatpush1.xpose.msra.mxu0 %v80
    %195 = vmatprep.subr.mxu0 0.0
    %196 = vmatpush1.xpose.msra.mxu0 %v81
    %197 = vmatprep.subr.mxu0 0.0
    %198 = vmatpush1.xpose.msra.mxu0 %v82
    %199 = vmatprep.subr.mxu0 0.0
    %200 = vmatpush1.xpose.msra.mxu0 %v83
    %201 = vmatprep.subr.mxu0 0.0
    %202 = vmatpush1.xpose.msra.mxu0 %v84
    %203 = vmatprep.subr.mxu0 0.0
    %204 = vmatpush1.xpose.msra.mxu0 %v85
    %205 = vmatprep.subr.mxu0 0.0
    %206 = vmatpush1.xpose.msra.mxu0 %v86
    %207 = vmatprep.subr.mxu0 0.0
    %208 = vmatpush1.xpose.msra.mxu0 %v87
    %209 = vmatprep.subr.mxu0 0.0
    %210 = vmatpush1.xpose.msra.mxu0 %v88
    %211 = vmatprep.subr.mxu0 0.0
    %212 = vmatpush1.xpose.msra.mxu0 %v89
    %213 = vmatprep.subr.mxu0 0.0
    %214 = vmatpush1.xpose.msra.mxu0 %v90
    %215 = vmatprep.subr.mxu0 0.0
    %216 = vmatpush1.xpose.msra.mxu0 %v91
    %217 = vmatprep.subr.mxu0 0.0
    %218 = vmatpush1.xpose.msra.mxu0 %v92
    %219 = vmatprep.subr.mxu0 0.0
    %220 = vmatpush1.xpose.msra.mxu0 0.0
    %221 = vmatprep.subr.mxu0 0.0
    %222 = vmatpush1.xpose.msra.mxu0 0.0
    %223 = vmatprep.subr.mxu0 0.0
    %224 = vmatpush1.xpose.msra.mxu0 0.0
    %225 = vmatprep.subr.mxu0 0.0
    %226 = vmatpush1.xpose.msra.mxu0 0.0
    %227 = vmatprep.subr.mxu0 0.0
    %228 = vmatpush1.xpose.msra.mxu0 0.0
    %229 = vmatprep.subr.mxu0 0.0
    %230 = vmatpush1.xpose.msra.mxu0 0.0
    %231 = vmatprep.subr.mxu0 0.0
    %232 = vmatpush1.xpose.msra.mxu0 0.0
    %233 = vmatprep.subr.mxu0 0.0
    %234 = vmatpush1.xpose.msra.mxu0 0.0
    %235 = vmatprep.subr.mxu0 0.0
    %236 = vmatpush1.xpose.msra.mxu0 0.0
    %237 = vmatprep.subr.mxu0 0.0
    %238 = vmatpush1.xpose.msra.mxu0 0.0
    %239 = vmatprep.subr.mxu0 0.0
    %240 = vmatpush1.xpose.msra.mxu0 0.0
    %241 = vmatprep.subr.mxu0 0.0
    %242 = vmatpush1.xpose.msra.mxu0 0.0
    %243 = vmatprep.subr.mxu0 0.0
    %244 = vmatpush1.xpose.msra.mxu0 0.0
    %245 = vmatprep.subr.mxu0 0.0
    %246 = vmatpush1.xpose.msra.mxu0 0.0
    %247 = vmatprep.subr.mxu0 0.0
    %248 = vmatpush1.xpose.msra.mxu0 0.0
    %249 = vmatprep.subr.mxu0 0.0
    %250 = vmatpush1.xpose.msra.mxu0 0.0
    %251 = vmatprep.mubr.f32.mxu0 0.0
    %252 = vmatmul.mubr.f32.gmra.mrb[0].mxu0 %v43
    %v253 = vpop.f32.mrb[0].mxu0
    %v254 = vadd.f32 %v106, %v253
    %v255 = vpop.f32.mrb[0].mxu0
    %256 = vmatprep.mubr.f32.mxu0 0.0
    %257 = vmatmul.mubr.f32.gmra.mrb[0].mxu0 %v44
    %v258 = vpop.f32.mrb[0].mxu0
    %v259 = vadd.f32 %v106, %v258
    %v260 = vpop.f32.mrb[0].mxu0
    %261 = vdwg.mxu0
    %v262 = vmul.f32 %v177, 0.033333335
    %v263 = vmul.f32 %v179, 0.033333335
    %v264 = vmul.f32 %v254, 0.033333335
    %v265 = vmul.f32 %v183, 0.033333335
    %v266 = vmul.f32 %v185, 0.033333335
    %v267 = vmul.f32 %v259, 0.033333335
    %v268 = vtanh.pop %v262
    %v269 = vtanh.pop %v263
    %v270 = vtanh.pop %v264
    %v271 = vtanh.pop %v265
    %v272 = vtanh.pop %v266
    %v273 = vtanh.pop %v267
    %v274 = vmul.f32 %v268, 30.0
    %v275 = vmul.f32 %v269, 30.0
    %v276 = vmul.f32 %v270, 30.0
    %v277 = vmul.f32 %v271, 30.0
    %v278 = vmul.f32 %v272, 30.0
    %v279 = vmul.f32 %v273, 30.0
    %v280 = vmul.f32 %v274, 0.5
    %v281 = vmul.f32 %v275, 0.5
    %v282 = vmul.f32 %v276, 0.5
    %v283 = vmul.f32 %v277, 0.5
    %v284 = vmul.f32 %v278, 0.5
    %v285 = vmul.f32 %v279, 0.5
    %286 = vst [vmem:[#allocation7] sm:$0xff] %v280
    %287 = vst [vmem:[#allocation7 + $0x8] sm:$0xff] %v281
    %288 = vst [vmem:[#allocation7 + $0x10] sm:$0xff] %v282
    %289 = vst [vmem:[#allocation7 + $0x18] sm:$0xff] %v283
    %290 = vst [vmem:[#allocation7 + $0x20] sm:$0xff] %v284
    %291 = vst [vmem:[#allocation7 + $0x28] sm:$0xff] %v285
    // Predicated region
    $region22: #{tpu_custom_call.1} parent=1 // pred_check
      _
    $region23: #{tpu_custom_call.1} parent=1 // pred_check_branch
      %293 = sbr.rel (0) target = $region25
    $region24: #{tpu_custom_call.1} parent=1 // pred_region
      %s295 = ssub.s32 768, 768
      %296 = vsyncadd [#allocation4], %s295
      %s297 = sshll.u32 [#allocation7], 4
      %s298 = int_to_ptr.vmem [resolvable:$true] %s297
      %303 = dma.vmem_to_hbm [thread:$0]  %s298, 768, %s3, [#allocation4], 384, 384, 24
    $region25: #{tpu_custom_call.1} parent=1 // pred_fallthru
      _
    // Predicated region
    $region26: #{tpu_custom_call.1} parent=1 // pred_check
      _
    $region27: #{tpu_custom_call.1} parent=1 // pred_check_branch
      %305 = sbr.rel (0) target = $region29
    $region28: #{tpu_custom_call.1} parent=1 // pred_region
      %306 = dma.done [#allocation4], 768
    $region29: #{tpu_custom_call.1} parent=1 // pred_fallthru
      _
    %307 = vsyncpa [#allocation3], 1
    %308 = vsyncpa [#allocation6], 1
    %309 = vsyncpa [#allocation4], 1

</llo_original>
